<compile_context>
chip_gen: v7x
topology: tpu7x:2x2x1
jax: 0.10.0
libtpu: 0.0.40
codegen_flags: <defaults>
</compile_context>

<pallas_src>
import functools

import numpy as np
import jax
import jax.numpy as jnp
from jax.experimental import pallas as pl
from jax.experimental.pallas import tpu as pltpu
from jax.scipy.special import gammaln, logsumexp

_MAX_TB = 32768   # per-tile batch width (multiple of 128); ~5 MiB VMEM/tile at this width
_SMALL_B = 512    # below this, a plain-jnp path beats the fixed pallas_call cost


def _round_up(x, m):
    return -(-x // m) * m


def _choose_tiling(batch):
    """>=2 'parallel' grid steps (v7x has 2 TensorCores), tiles capped at _MAX_TB."""
    bp0 = _round_up(batch, 128)
    n_tiles = max(2, -(-bp0 // _MAX_TB))
    tb = _round_up(-(-bp0 // n_tiles), 128)
    return n_tiles, tb, n_tiles * tb


def _dist_reward_kernel(xt_ref, w_ref, c_ref, o_ref, *, use_runtime_max):
    # xt_ref: (D, TB)  actions, batch on the 128-lane axis (lane-dense)
    # w_ref : (K, D)   alpha - 1 for the selected state (resident across tiles)
    # c_ref : (K, 1)   log mix weight + Dirichlet log-normalizer, shifted by -max_k
    # o_ref : (1, TB)  un-scaled reward sum_k exp(s_k); wrapper multiplies exp(max_k)
    logx = jnp.log(xt_ref[...])                          # (D, TB)
    s = c_ref[...]                                       # (K, 1) -> broadcasts to (K, TB)
    for d in range(xt_ref.shape[0]):                     # unrolled VPU FMA; MXU stays idle
        s = s + w_ref[:, d:d + 1] * logx[d:d + 1, :]
    if use_runtime_max:
        # Needed only when some alpha < 1 (then s_k can exceed c_k).
        m = jnp.max(s, axis=0, keepdims=True)
        m = jnp.maximum(m, jnp.float32(-1e30))           # all -inf -> output 0, not NaN
        o_ref[...] = jnp.exp(m) * jnp.sum(jnp.exp(s - m), axis=0, keepdims=True)
    else:
        # alpha >= 1  =>  s_k <= c_k <= 0 after the constant shift: exp never overflows.
        o_ref[...] = jnp.sum(jnp.exp(s), axis=0, keepdims=True)


def _run_pallas(xt, n_valid, w, c, use_runtime_max):
    d_dim, bp = xt.shape
    k_dim = w.shape[0]
    n_tiles, tb, bp_expect = _choose_tiling(n_valid)
    assert bp == bp_expect, (bp, bp_expect)
    kernel = functools.partial(_dist_reward_kernel, use_runtime_max=use_runtime_max)
    out = pl.pallas_call(
        kernel,
        grid=(n_tiles,),
        in_specs=[
            pl.BlockSpec((d_dim, tb), lambda i: (0, i)),     # action tile
            pl.BlockSpec((k_dim, d_dim), lambda i: (0, 0)),  # per-state weights (resident)
            pl.BlockSpec((k_dim, 1), lambda i: (0, 0)),      # per-state constants (resident)
        ],
        out_specs=pl.BlockSpec((1, tb), lambda i: (0, i)),   # lane-dense output row
        out_shape=jax.ShapeDtypeStruct((1, bp), jnp.float32),
        compiler_params=pltpu.CompilerParams(dimension_semantics=("parallel",)),
    )(xt, w, c)
    return out[0, :n_valid]


@functools.partial(jax.jit, static_argnames=("use_runtime_max",))
def _dist_reward_jit(state, action, w_all, c_all, logz_all, use_runtime_max):
    batch, _ = action.shape
    w = w_all[state]                                     # (K, D)
    c = c_all[state]                                     # (K, 1)
    scale = jnp.exp(logz_all[state])
    act = action.astype(jnp.float32)
    if batch < _SMALL_B:
        # Tiny batch: pallas_call fixed cost dwarfs the math; let XLA do it directly.
        s = jnp.log(act) @ w.T + c[:, 0]
        return scale * jnp.exp(logsumexp(s, axis=-1))
    _, _, bp = _choose_tiling(batch)
    if bp != batch:
        # Pad before the transpose so the pad fuses into the single relayout copy.
        act = jnp.pad(act, ((0, bp - batch), (0, 0)), constant_values=1.0)  # log(1) = 0
    xt = act.T                                           # (D, Bp) — batch on lanes
    return scale * _run_pallas(xt, batch, w, c, use_runtime_max)


@functools.partial(jax.jit, static_argnames=("use_runtime_max",))
def _dist_reward_t_jit(state, action_t, w_all, c_all, logz_all, use_runtime_max):
    _, batch = action_t.shape
    w = w_all[state]
    c = c_all[state]
    scale = jnp.exp(logz_all[state])
    xt = action_t.astype(jnp.float32)
    if batch < _SMALL_B:
        s = w @ jnp.log(xt) + c                          # (K, B)
        return scale * jnp.exp(logsumexp(s, axis=0))
    _, _, bp = _choose_tiling(batch)
    if bp != batch:
        xt = jnp.pad(xt, ((0, 0), (0, bp - batch)), constant_values=1.0)
    return scale * _run_pallas(xt, batch, w, c, use_runtime_max)


def dist_reward_pallas(state, action, params):
    """DistRewardNetwork.forward with polytope=None; action is (B, D) on the simplex."""
    w_all, c_all, logz_all, needs_max = params
    return _dist_reward_jit(jnp.int32(state), action, w_all, c_all, logz_all,
                            use_runtime_max=bool(needs_max))


def dist_reward_pallas_t(state, action_t, params):
    """Same, but ingests actions already laid out as (D, B): no wrapper relayout copy."""
    w_all, c_all, logz_all, needs_max = params
    return _dist_reward_t_jit(jnp.int32(state), action_t, w_all, c_all, logz_all,
                              use_runtime_max=bool(needs_max))


def make_params(n_dimension, n_states, seed):
    """Per-state mixture-of-Dirichlet parameters, mirroring __init__ (n_dist = 14).

    Returns (w_all, c_all, logz_all, needs_runtime_max):
      w_all    (S, K, D): alpha - 1
      c_all    (S, K, 1): log mix weight + Dirichlet log-normalizer, minus per-state max
      logz_all (S,)     : the per-state max (folded logsumexp stabilizer)
      needs_runtime_max : True iff any alpha < 1 (kernel then keeps a per-element max)
    """
    n_dist = 14
    rng = np.random.default_rng(seed)
    w_list, c_list, z_list = [], [], []
    any_lt_one = False
    for _ in range(n_states):
        p_mix = rng.random(n_dist)
        if n_dimension == 3:
            alpha = rng.random((n_dist, n_dimension)) * 10.0 + 1.0
        else:
            alpha = (rng.random((n_dist, n_dimension)) / n_dimension
                     + rng.random((n_dist, n_dimension)) * 0.2)
        any_lt_one |= bool(np.any(alpha < 1.0))
        alpha = jnp.asarray(alpha, jnp.float32)
        log_w = jnp.log(jnp.asarray(p_mix / p_mix.sum(), jnp.float32))
        log_norm = gammaln(jnp.sum(alpha, axis=-1)) - jnp.sum(gammaln(alpha), axis=-1)
        c = log_w + log_norm                              # (K,)
        max_c = jnp.max(c)
        w_list.append(alpha - 1.0)
        c_list.append((c - max_c)[:, None])
        z_list.append(max_c)
    return (jnp.stack(w_list).astype(jnp.float32),
            jnp.stack(c_list).astype(jnp.float32),
            jnp.stack(z_list).astype(jnp.float32),
            any_lt_one)


def dist_reward_reference(state, action, params):
    """Pure-JAX reference: exp(MixtureSameFamily(Categorical, Dirichlet).log_prob(action))."""
    w_all, c_all, logz_all, _ = params
    logx = jnp.log(action.astype(jnp.float32))
    s = logx @ w_all[state].T + c_all[state][:, 0]
    return jnp.exp(logz_all[state] + logsumexp(s, axis=-1))


if __name__ == "__main__":
    n_dimension, n_states = 3, 4
    params3 = make_params(n_dimension, n_states, seed=0)

    key = jax.random.PRNGKey(0)
    k_act, k_act4 = jax.random.split(key)

    # Batch large enough to take the Pallas path (2 "parallel" tiles of 512 lanes);
    # still a tiny problem in absolute terms (1024 x 3 f32 = 12 KiB).
    batch = 1024
    action = jax.random.dirichlet(
        k_act, jnp.ones((n_dimension,), jnp.float32), shape=(batch,)
    ).astype(jnp.float32)
    # One simplex-boundary row: log(0) path must yield reward 0 (not NaN).
    action = action.at[0].set(jnp.array([0.0, 0.5, 0.5], jnp.float32))

    state = 2
    reward = jax.block_until_ready(dist_reward_pallas(state, action, params3))
    ref = dist_reward_reference(state, action, params3)
    assert reward.shape == (batch,)
    assert np.isfinite(np.asarray(reward)).all(), "NaN/Inf in kernel output"
    assert np.allclose(np.asarray(reward), np.asarray(ref), rtol=1e-4, atol=1e-5)

    # (D, B) ingestion entry point (skips the wrapper relayout copy).
    reward_t = jax.block_until_ready(dist_reward_pallas_t(state, action.T, params3))
    assert np.allclose(np.asarray(reward_t), np.asarray(ref), rtol=1e-4, atol=1e-5)

    # Small-batch fast path (no pallas launch).
    small = action[:8]
    r_small = jax.block_until_ready(dist_reward_pallas(1, small, params3))
    ref_small = dist_reward_reference(1, small, params3)
    assert np.allclose(np.asarray(r_small), np.asarray(ref_small), rtol=1e-4, atol=1e-5)

    # alpha < 1 construction (n_dimension != 3) exercises the in-kernel-max variant.
    params4 = make_params(4, 2, seed=1)
    action4 = jax.random.dirichlet(
        k_act4, jnp.ones((4,), jnp.float32), shape=(batch,)
    ).astype(jnp.float32)
    r4 = jax.block_until_ready(dist_reward_pallas(0, action4, params4))
    ref4 = dist_reward_reference(0, action4, params4)
    assert np.allclose(np.asarray(r4), np.asarray(ref4), rtol=1e-4, atol=1e-5)

    print("KERNEL_OK")
</pallas_src>

<mosaic_0001>
module attributes {stable_mosaic.version = 11 : i64} {
  func.func @_dist_reward_kernel(%arg0: i32, %arg1: memref<3x512xf32, #tpu.memory_space<vmem>>, %arg2: memref<14x3xf32, #tpu.memory_space<vmem>>, %arg3: memref<14x1xf32, #tpu.memory_space<vmem>>, %arg4: memref<1x512xf32, #tpu.memory_space<vmem>>) attributes {dimension_semantics = [#tpu.dimension_semantics<parallel>], iteration_bounds = array<i64: 2>, scalar_prefetch = 0 : i64, scratch_operands = 0 : i64, tpu.core_type = #tpu.core_type<tc>, window_params = [{transform_indices = @transform_0, window_bounds = array<i64: 3, 512>}, {pipeline_mode = #tpu.pipeline_mode<synchronous>, transform_indices = @transform_1, window_bounds = array<i64: 14, 3>}, {pipeline_mode = #tpu.pipeline_mode<synchronous>, transform_indices = @transform_2, window_bounds = array<i64: 14, 1>}, {transform_indices = @transform_3, window_bounds = array<i64: 1, 512>}]} {
    %c0 = arith.constant 0 : index
    %c0_0 = arith.constant 0 : index
    %0 = vector.load %arg1[%c0, %c0_0] : memref<3x512xf32, #tpu.memory_space<vmem>>, vector<3x512xf32>
    %1 = math.log %0 : vector<3x512xf32>
    %c0_1 = arith.constant 0 : index
    %c0_2 = arith.constant 0 : index
    %2 = vector.load %arg3[%c0_1, %c0_2] : memref<14x1xf32, #tpu.memory_space<vmem>>, vector<14x1xf32>
    %c0_3 = arith.constant 0 : index
    %c0_4 = arith.constant 0 : index
    %3 = vector.load %arg2[%c0_3, %c0_4] : memref<14x3xf32, #tpu.memory_space<vmem>>, vector<14x1xf32>
    %4 = vector.extract_strided_slice %1 {offsets = [0, 0], sizes = [1, 512], strides = [1, 1]} : vector<3x512xf32> to vector<1x512xf32>
    %5 = vector.broadcast %3 : vector<14x1xf32> to vector<14x512xf32>
    %6 = vector.broadcast %4 : vector<1x512xf32> to vector<14x512xf32>
    %7 = arith.mulf %5, %6 : vector<14x512xf32>
    %8 = vector.broadcast %2 : vector<14x1xf32> to vector<14x512xf32>
    %9 = arith.addf %8, %7 : vector<14x512xf32>
    %c0_5 = arith.constant 0 : index
    %c1 = arith.constant 1 : index
    %10 = vector.load %arg2[%c0_5, %c1] : memref<14x3xf32, #tpu.memory_space<vmem>>, vector<14x1xf32>
    %11 = vector.extract_strided_slice %1 {offsets = [1, 0], sizes = [1, 512], strides = [1, 1]} : vector<3x512xf32> to vector<1x512xf32>
    %12 = vector.broadcast %10 : vector<14x1xf32> to vector<14x512xf32>
    %13 = vector.broadcast %11 : vector<1x512xf32> to vector<14x512xf32>
    %14 = arith.mulf %12, %13 : vector<14x512xf32>
    %15 = arith.addf %9, %14 : vector<14x512xf32>
    %c0_6 = arith.constant 0 : index
    %c2 = arith.constant 2 : index
    %16 = vector.load %arg2[%c0_6, %c2] : memref<14x3xf32, #tpu.memory_space<vmem>>, vector<14x1xf32>
    %17 = vector.extract_strided_slice %1 {offsets = [2, 0], sizes = [1, 512], strides = [1, 1]} : vector<3x512xf32> to vector<1x512xf32>
    %18 = vector.broadcast %16 : vector<14x1xf32> to vector<14x512xf32>
    %19 = vector.broadcast %17 : vector<1x512xf32> to vector<14x512xf32>
    %20 = arith.mulf %18, %19 : vector<14x512xf32>
    %21 = arith.addf %15, %20 : vector<14x512xf32>
    %22 = math.exp %21 : vector<14x512xf32>
    %cst = arith.constant dense<0.000000e+00> : vector<512xf32>
    %23 = vector.multi_reduction <add>, %22, %cst [0] : vector<14x512xf32> to vector<512xf32>
    %24 = vector.shape_cast %23 : vector<512xf32> to vector<1x512xf32>
    %c0_7 = arith.constant 0 : index
    %c0_8 = arith.constant 0 : index
    %25 = vector.load %arg4[%c0_7, %c0_8] : memref<1x512xf32, #tpu.memory_space<vmem>>, vector<1x512xf32>
    tpu.vector_store %arg4[%c0_7, %c0_8], %24 {strides = array<i32>} : memref<1x512xf32, #tpu.memory_space<vmem>>, vector<1x512xf32>,
    return
  }
  func.func @transform_0(%arg0: i32) -> (i32, i32) {
    %c0_i32 = arith.constant 0 : i32
    %c0_i32_0 = arith.constant 0 : i32
    return %c0_i32, %arg0 : i32, i32
  }
  func.func @transform_1(%arg0: i32) -> (i32, i32) {
    %c0_i32 = arith.constant 0 : i32
    %c0_i32_0 = arith.constant 0 : i32
    %c0_i32_1 = arith.constant 0 : i32
    return %c0_i32, %c0_i32_0 : i32, i32
  }
  func.func @transform_2(%arg0: i32) -> (i32, i32) {
    %c0_i32 = arith.constant 0 : i32
    %c0_i32_0 = arith.constant 0 : i32
    %c0_i32_1 = arith.constant 0 : i32
    return %c0_i32, %c0_i32_0 : i32, i32
  }
  func.func @transform_3(%arg0: i32) -> (i32, i32) {
    %c0_i32 = arith.constant 0 : i32
    %c0_i32_0 = arith.constant 0 : i32
    return %c0_i32, %arg0 : i32, i32
  }
}

</mosaic_0001>

<llo_original>
// kernel: _dist_reward_jit.1
$region0: #{_dist_reward_jit.1}
  #allocation0 [shape = 'u32[]', space=smem, size = 0x4, offset = 0x4, fixed_abs, tag = 'smem constant byte address 0x4 - core index']
  #allocation1 [shape = 'u32[144,128]{1,0:T(1,128)}', space=vmem, size = 0x12000, scoped, tag = 'internal scratch']
  %s0 = inlined_call_operand.vmem [shape: f32[3,1024], index: 0, kind: input, shape index: {}]
  %s1 = inlined_call_operand.vmem [shape: f32[14,3], index: 1, kind: input, shape index: {}]
  %s2 = inlined_call_operand.vmem [shape: f32[14,1], index: 2, kind: input, shape index: {}]
  %s3 = inlined_call_operand.vmem [shape: f32[1,1024], index: 3, kind: output, shape index: {}]
  %s4 = sld [smem:[#allocation0]]
  $region45: #{_dist_reward_jit.1} parent=0
    _
  %s6 = ssub.s32 1, %s4
  %s7 = scalar_select 0, %s6, %s4
  loop: start=0, step=1, limit=4
  $region2: #{_dist_reward_jit.1} parent=0 // loop_pre_header
    _
  $region3: #{_dist_reward_jit.1} parent=0 // loop_header
    %s9 = sphi 0, %s13
    %p10 = scmp.ge.s32.totalorder %s9, 4
    %s19 = sphi 0, %s21
    %s22 = sphi 0, %s19
    %s23 = sphi 0, %s22
    %s39 = sphi 0, %s23
    %s43 = sphi 0, %s43
    %s45 = sphi 0, %s43
    %s46 = sphi 0, %s45
    %s60 = sphi 0, %s46
    %s64 = sphi 0, %s64
    %s66 = sphi 0, %s64
    %s67 = sphi 0, %s66
    %s81 = sphi 0, %s67
    %s87 = sphi 0, %s89
    %s90 = sphi 0, %s87
    %s91 = sphi 0, %s90
    %s107 = sphi 0, %s91
  $region4: #{_dist_reward_jit.1} parent=0 // loop_header_branch
    %12 = sbr.rel (%p10) target = $region8
  $region5: #{_dist_reward_jit.1} parent=0 // loop_body
    %s14 = ssub.s32 %s9, 1
    %s15 = ssub.s32 %s9, 2
    %s16 = sadd.s32 %s9, 1
    %s17 = ssub.s32 %s9, %s16
    %p18 = scmp.eq.s32.totalorder %s17, 0
    %s20 = sadd.s32 %s19, 1
    %s21 = scalar_select %p18, %s19, %s20
    %p24 = pneg %p18
    %p25 = scmp.eq.s32.totalorder %s9, 1
    %p26 = por %p24, %p25
    %p27 = scmp.ne.s32.totalorder %s19, %s22
    %p28 = scmp.eq.s32.totalorder %s9, 0
    %p29 = por %p27, %p28
    %p30 = scmp.ne.s32.totalorder %s19, %s22
    %p31 = scmp.eq.s32.totalorder %s14, 1
    %p32 = por %p30, %p31
    %p33 = scmp.ne.s32.totalorder %s22, %s23
    %p34 = scmp.eq.s32.totalorder %s14, 0
    %p35 = por %p33, %p34
    %p36 = scmp.ne.s32.totalorder %s22, %s23
    %p37 = scmp.eq.s32.totalorder %s15, 1
    %p38 = por %p36, %p37
    %p40 = scmp.ne.s32.totalorder %s23, %s39
    %p41 = scmp.eq.s32.totalorder %s15, 0
    %p42 = por %p40, %p41
    %s44 = sadd.s32 %s43, 1
    %p47 = scmp.eq.s32.totalorder %s9, 1
    %p48 = scmp.ne.s32.totalorder %s43, %s45
    %p49 = scmp.eq.s32.totalorder %s9, 0
    %p50 = por %p48, %p49
    %p51 = scmp.ne.s32.totalorder %s43, %s45
    %p52 = scmp.eq.s32.totalorder %s14, 1
    %p53 = por %p51, %p52
    %p54 = scmp.ne.s32.totalorder %s45, %s46
    %p55 = scmp.eq.s32.totalorder %s14, 0
    %p56 = por %p54, %p55
    %p57 = scmp.ne.s32.totalorder %s45, %s46
    %p58 = scmp.eq.s32.totalorder %s15, 1
    %p59 = por %p57, %p58
    %p61 = scmp.ne.s32.totalorder %s46, %s60
    %p62 = scmp.eq.s32.totalorder %s15, 0
    %p63 = por %p61, %p62
    %s65 = sadd.s32 %s64, 1
    %p68 = scmp.eq.s32.totalorder %s9, 1
    %p69 = scmp.ne.s32.totalorder %s64, %s66
    %p70 = scmp.eq.s32.totalorder %s9, 0
    %p71 = por %p69, %p70
    %p72 = scmp.ne.s32.totalorder %s64, %s66
    %p73 = scmp.eq.s32.totalorder %s14, 1
    %p74 = por %p72, %p73
    %p75 = scmp.ne.s32.totalorder %s66, %s67
    %p76 = scmp.eq.s32.totalorder %s14, 0
    %p77 = por %p75, %p76
    %p78 = scmp.ne.s32.totalorder %s66, %s67
    %p79 = scmp.eq.s32.totalorder %s15, 1
    %p80 = por %p78, %p79
    %p82 = scmp.ne.s32.totalorder %s67, %s81
    %p83 = scmp.eq.s32.totalorder %s15, 0
    %p84 = por %p82, %p83
    %s85 = ssub.s32 %s9, %s16
    %p86 = scmp.eq.s32.totalorder %s85, 0
    %s88 = sadd.s32 %s87, 1
    %s89 = scalar_select %p86, %s87, %s88
    %p92 = pneg %p86
    %p93 = scmp.eq.s32.totalorder %s9, 1
    %p94 = por %p92, %p93
    %p95 = scmp.ne.s32.totalorder %s87, %s90
    %p96 = scmp.eq.s32.totalorder %s9, 0
    %p97 = por %p95, %p96
    %p98 = scmp.ne.s32.totalorder %s87, %s90
    %p99 = scmp.eq.s32.totalorder %s14, 1
    %p100 = por %p98, %p99
    %p101 = scmp.ne.s32.totalorder %s90, %s91
    %p102 = scmp.eq.s32.totalorder %s14, 0
    %p103 = por %p101, %p102
    %p104 = scmp.ne.s32.totalorder %s90, %s91
    %p105 = scmp.eq.s32.totalorder %s15, 1
    %p106 = por %p104, %p105
    %p108 = scmp.ne.s32.totalorder %s91, %s107
    %p109 = scmp.eq.s32.totalorder %s15, 0
    %p110 = por %p108, %p109
    %p111 = scmp.le.s32.totalorder 1, %s9
    %p112 = scmp.lt.s32.totalorder %s9, 3
    %p113 = pnand %p111, %p112
    %p114 = pneg %p113
    // Predicated region
    $region9: #{_dist_reward_jit.1} parent=5 // pred_check
      _
    $region10: #{_dist_reward_jit.1} parent=5 // pred_check_branch
      %116 = sbr.rel (%p113) target = $region12
    $region11: #{_dist_reward_jit.1} parent=5 // pred_region
      %s117 = ssub.s32 %s9, 1
      // Predicated region
      $region13: #{_dist_reward_jit.1} parent=11 // pred_check
        %p118 = pneg %p56
      $region14: #{_dist_reward_jit.1} parent=11 // pred_check_branch
        %120 = sbr.rel (%p118) target = $region16
      $region15: #{_dist_reward_jit.1} parent=11 // pred_region
        _
      $region16: #{_dist_reward_jit.1} parent=11 // pred_fallthru
        _
      // Predicated region
      $region17: #{_dist_reward_jit.1} parent=11 // pred_check
        %p121 = pneg %p77
      $region18: #{_dist_reward_jit.1} parent=11 // pred_check_branch
        %123 = sbr.rel (%p121) target = $region20
      $region19: #{_dist_reward_jit.1} parent=11 // pred_region
        _
      $region20: #{_dist_reward_jit.1} parent=11 // pred_fallthru
        _
    $region12: #{_dist_reward_jit.1} parent=5 // pred_fallthru
      _
    %p124 = scmp.lt.s32.totalorder %s9, 2
    // Predicated region
    $region21: #{_dist_reward_jit.1} parent=5 // pred_check
      %p125 = pneg %p124
    $region22: #{_dist_reward_jit.1} parent=5 // pred_check_branch
      %127 = sbr.rel (%p125) target = $region24
    $region23: #{_dist_reward_jit.1} parent=5 // pred_region
      // Predicated region
      $region25: #{_dist_reward_jit.1} parent=23 // pred_check
        %p128 = pneg %p29
      $region26: #{_dist_reward_jit.1} parent=23 // pred_check_branch
        %130 = sbr.rel (%p128) target = $region28
      $region27: #{_dist_reward_jit.1} parent=23 // pred_region
        %s131 = smul.u32 4, %s9
        %p132 = scmp.lt.s32.totalorder %s131, 7
        %s133 = scalar_select %p132, %s131, 7
        %s134 = smul.addr %s133, 4
        %s135 = scalar_lea.vmem %s0, %s134
        %s136 = smul.u32 4, %s9
      $region28: #{_dist_reward_jit.1} parent=23 // pred_fallthru
        _
    $region24: #{_dist_reward_jit.1} parent=5 // pred_fallthru
      _
    %p137 = scmp.le.s32.totalorder 1, %s9
    %p138 = scmp.lt.s32.totalorder %s9, 3
    %p139 = pnand %p137, %p138
    %p140 = pneg %p139
    // Predicated region
    $region29: #{_dist_reward_jit.1} parent=5 // pred_check
      _
    $region30: #{_dist_reward_jit.1} parent=5 // pred_check_branch
      %142 = sbr.rel (%p139) target = $region32
    $region31: #{_dist_reward_jit.1} parent=5 // pred_region
      %s143 = ssub.s32 %s9, 1
      %s144 = smul.u32 4, %s14
      %p145 = scmp.lt.s32.totalorder %s144, 7
      %s146 = scalar_select %p145, %s144, 7
      %s147 = smul.addr %s146, 4
      %s148 = scalar_lea.vmem %s0, %s147
      %p149 = pneg %p35
      %p150 = pneg %p32
      %p151 = pneg %p56
      %p152 = pneg %p53
      %p153 = pneg %p77
      %p154 = pneg %p74
      %p155 = pneg %p103
      %p156 = pneg %p100
      %s157 = smul.u32 4, %s14
      %p158 = scmp.lt.s32.totalorder %s157, 7
      %s159 = scalar_select %p158, %s157, 7
      %s160 = scalar_lea.vmem %s3, %s159
      %s161 = smul.u32 4, %s14
      %p162 = scmp.lt.s32.totalorder %s161, 7
      %s163 = scalar_select %p162, %s161, 7
      %s164 = smul.addr %s163, 4
      %s165 = scalar_lea.vmem %s0, %s164
      %s166 = smul.u32 4, %s14
      %s167 = smul.u32 4, %s14
      %p168 = scmp.lt.s32.totalorder %s167, 7
      %s169 = scalar_select %p168, %s167, 7
      %s170 = scalar_lea.vmem %s3, %s169
      %s171 = smul.u32 4, %s14
      %v172 = vld [vmem:[%s165] sm:$0x77]
      %v173 = vld [vmem:[%s165 + $0x8] sm:$0x77]
      %v174 = vlog2.pop %v172
      %v175 = vmul.f32 %v174, 0.6931472
      %v176 = vlog2.pop %v173
      %v177 = vmul.f32 %v176, 0.6931472
      %v178 = vld [vmem:[%s2] sm:$0xff]
      %v179 = vld [vmem:[%s2 + $0x8] sm:$0x3f]
      %v180 = vld [vmem:[%s1] sm:$0xff]
      %v181 = vld [vmem:[%s1 + $0x8] sm:$0x3f]
      %183 = vset.pattern.permute.xlu0 0
      %184 = vperm.xlu0 %183, %v180
      %v185 = vpop.permute.xlu0 %184
      %188 = vset.pattern.permute.xlu0 0
      %189 = vperm.xlu0 %188, %v181
      %v190 = vpop.permute.xlu0 %189
      %v194 = vlaneseq
      %v195 = vshrl.u32 %v194, 7
      %v196 = vsub.s32 0, %v195
      %v197 = vrot.slane %v175, %v196
      %v198 = vlaneseq
      %v199 = vshrl.u32 %v198, 7
      %v200 = vsub.s32 4, %v199
      %v201 = vrot.slane %v175, %v200
      %v202 = vlaneseq
      %v203 = vshrl.u32 %v202, 7
      %v204 = vsub.s32 0, %v203
      %v205 = vrot.slane %v177, %v204
      %v206 = vlaneseq
      %v207 = vshrl.u32 %v206, 7
      %v208 = vsub.s32 4, %v207
      %v209 = vrot.slane %v177, %v208
      %v214 = vlaneseq
      %v215 = vshrl.u32 %v214, 7
      %v216 = vsub.s32 0, %v215
      %v217 = vrot.slane %v197, %v216
      %v218 = vlaneseq
      %v219 = vshrl.u32 %v218, 7
      %v220 = vsub.s32 0, %v219
      %v221 = vrot.slane %v201, %v220
      %v222 = vlaneseq
      %v223 = vshrl.u32 %v222, 7
      %v224 = vsub.s32 0, %v223
      %v225 = vrot.slane %v205, %v224
      %v226 = vlaneseq
      %v227 = vshrl.u32 %v226, 7
      %v228 = vsub.s32 0, %v227
      %v229 = vrot.slane %v209, %v228
      %v230 = vmul.f32 %v185, %v217
      %v231 = vmul.f32 %v185, %v221
      %v232 = vmul.f32 %v185, %v225
      %v233 = vmul.f32 %v185, %v229
      %v234 = vmul.f32 %v190, %v217
      %v235 = vmul.f32 %v190, %v221
      %v236 = vmul.f32 %v190, %v225
      %v237 = vmul.f32 %v190, %v229
      %239 = vset.pattern.permute.xlu0 0
      %240 = vperm.xlu0 %239, %v178
      %v241 = vpop.permute.xlu0 %240
      %244 = vset.pattern.permute.xlu0 0
      %245 = vperm.xlu0 %244, %v179
      %v246 = vpop.permute.xlu0 %245
      %v248 = vadd.f32 %v241, %v230
      %v249 = vadd.f32 %v241, %v231
      %v250 = vadd.f32 %v241, %v232
      %v251 = vadd.f32 %v241, %v233
      %v252 = vadd.f32 %v246, %v234
      %v253 = vadd.f32 %v246, %v235
      %v254 = vadd.f32 %v246, %v236
      %v255 = vadd.f32 %v246, %v237
      %256 = vset.pattern.permute.xlu0 1
      %257 = vperm.xlu0 %256, %v180
      %v258 = vpop.permute.xlu0 %257
      %260 = vset.pattern.permute.xlu0 1
      %261 = vperm.xlu0 %260, %v181
      %v262 = vpop.permute.xlu0 %261
      %v264 = vlaneseq
      %v265 = vshrl.u32 %v264, 7
      %v266 = vsub.s32 1, %v265
      %v267 = vrot.slane %v175, %v266
      %v268 = vlaneseq
      %v269 = vshrl.u32 %v268, 7
      %v270 = vsub.s32 5, %v269
      %v271 = vrot.slane %v175, %v270
      %v272 = vlaneseq
      %v273 = vshrl.u32 %v272, 7
      %v274 = vsub.s32 1, %v273
      %v275 = vrot.slane %v177, %v274
      %v276 = vlaneseq
      %v277 = vshrl.u32 %v276, 7
      %v278 = vsub.s32 5, %v277
      %v279 = vrot.slane %v177, %v278
      %v284 = vlaneseq
      %v285 = vshrl.u32 %v284, 7
      %v286 = vsub.s32 1, %v285
      %v287 = vrot.slane %v267, %v286
      %v288 = vlaneseq
      %v289 = vshrl.u32 %v288, 7
      %v290 = vsub.s32 1, %v289
      %v291 = vrot.slane %v271, %v290
      %v292 = vlaneseq
      %v293 = vshrl.u32 %v292, 7
      %v294 = vsub.s32 1, %v293
      %v295 = vrot.slane %v275, %v294
      %v296 = vlaneseq
      %v297 = vshrl.u32 %v296, 7
      %v298 = vsub.s32 1, %v297
      %v299 = vrot.slane %v279, %v298
      %v300 = vmul.f32 %v258, %v287
      %v301 = vmul.f32 %v258, %v291
      %v302 = vmul.f32 %v258, %v295
      %v303 = vmul.f32 %v258, %v299
      %v304 = vmul.f32 %v262, %v287
      %v305 = vmul.f32 %v262, %v291
      %v306 = vmul.f32 %v262, %v295
      %v307 = vmul.f32 %v262, %v299
      %v308 = vadd.f32 %v248, %v300
      %v309 = vadd.f32 %v249, %v301
      %v310 = vadd.f32 %v250, %v302
      %v311 = vadd.f32 %v251, %v303
      %v312 = vadd.f32 %v252, %v304
      %v313 = vadd.f32 %v253, %v305
      %v314 = vadd.f32 %v254, %v306
      %v315 = vadd.f32 %v255, %v307
      %316 = vset.pattern.permute.xlu0 2
      %317 = vperm.xlu0 %316, %v180
      %v318 = vpop.permute.xlu0 %317
      %320 = vset.pattern.permute.xlu0 2
      %321 = vperm.xlu0 %320, %v181
      %v322 = vpop.permute.xlu0 %321
      %v324 = vlaneseq
      %v325 = vshrl.u32 %v324, 7
      %v326 = vsub.s32 2, %v325
      %v327 = vrot.slane %v175, %v326
      %v328 = vlaneseq
      %v329 = vshrl.u32 %v328, 7
      %v330 = vsub.s32 6, %v329
      %v331 = vrot.slane %v175, %v330
      %v332 = vlaneseq
      %v333 = vshrl.u32 %v332, 7
      %v334 = vsub.s32 2, %v333
      %v335 = vrot.slane %v177, %v334
      %v336 = vlaneseq
      %v337 = vshrl.u32 %v336, 7
      %v338 = vsub.s32 6, %v337
      %v339 = vrot.slane %v177, %v338
      %v344 = vlaneseq
      %v345 = vshrl.u32 %v344, 7
      %v346 = vsub.s32 2, %v345
      %v347 = vrot.slane %v327, %v346
      %v348 = vlaneseq
      %v349 = vshrl.u32 %v348, 7
      %v350 = vsub.s32 2, %v349
      %v351 = vrot.slane %v331, %v350
      %v352 = vlaneseq
      %v353 = vshrl.u32 %v352, 7
      %v354 = vsub.s32 2, %v353
      %v355 = vrot.slane %v335, %v354
      %v356 = vlaneseq
      %v357 = vshrl.u32 %v356, 7
      %v358 = vsub.s32 2, %v357
      %v359 = vrot.slane %v339, %v358
      %v360 = vmul.f32 %v318, %v347
      %v361 = vmul.f32 %v318, %v351
      %v362 = vmul.f32 %v318, %v355
      %v363 = vmul.f32 %v318, %v359
      %v364 = vmul.f32 %v322, %v347
      %v365 = vmul.f32 %v322, %v351
      %v366 = vmul.f32 %v322, %v355
      %v367 = vmul.f32 %v322, %v359
      %v368 = vadd.f32 %v308, %v360
      %v369 = vadd.f32 %v309, %v361
      %v370 = vadd.f32 %v310, %v362
      %v371 = vadd.f32 %v311, %v363
      %v372 = vadd.f32 %v312, %v364
      %v373 = vadd.f32 %v313, %v365
      %v374 = vadd.f32 %v314, %v366
      %v375 = vadd.f32 %v315, %v367
      %v376 = vmul.f32 %v368, 1.442695
      %v377 = vpow.pop %v376
      %v378 = vmul.f32 %v369, 1.442695
      %v379 = vpow.pop %v378
      %v380 = vmul.f32 %v370, 1.442695
      %v381 = vpow.pop %v380
      %v382 = vmul.f32 %v371, 1.442695
      %v383 = vpow.pop %v382
      %v384 = vmul.f32 %v372, 1.442695
      %v385 = vpow.pop %v384
      %v386 = vmul.f32 %v373, 1.442695
      %v387 = vpow.pop %v386
      %v388 = vmul.f32 %v374, 1.442695
      %v389 = vpow.pop %v388
      %v390 = vmul.f32 %v375, 1.442695
      %v391 = vpow.pop %v390
      %vm392 = vcmask 1045504
      %v393 = vsel %vm392, %v385, 0.0
      %v394 = vadd.f32 %v377, %v393
      %v395 = vrot.slane %v394, 4
      %v396 = vadd.f32 %v394, %v395
      %v397 = vrot.slane %v396, 2
      %v398 = vadd.f32 %v396, %v397
      %v399 = vrot.slane %v398, 1
      %v400 = vadd.f32 %v398, %v399
      %v401 = vsel %vm392, %v387, 0.0
      %v402 = vadd.f32 %v379, %v401
      %v403 = vrot.slane %v402, 4
      %v404 = vadd.f32 %v402, %v403
      %v405 = vrot.slane %v404, 2
      %v406 = vadd.f32 %v404, %v405
      %v407 = vrot.slane %v406, 1
      %v408 = vadd.f32 %v406, %v407
      %v409 = vsel %vm392, %v389, 0.0
      %v410 = vadd.f32 %v381, %v409
      %v411 = vrot.slane %v410, 4
      %v412 = vadd.f32 %v410, %v411
      %v413 = vrot.slane %v412, 2
      %v414 = vadd.f32 %v412, %v413
      %v415 = vrot.slane %v414, 1
      %v416 = vadd.f32 %v414, %v415
      %v417 = vsel %vm392, %v391, 0.0
      %v418 = vadd.f32 %v383, %v417
      %v419 = vrot.slane %v418, 4
      %v420 = vadd.f32 %v418, %v419
      %v421 = vrot.slane %v420, 2
      %v422 = vadd.f32 %v420, %v421
      %v423 = vrot.slane %v422, 1
      %v424 = vadd.f32 %v422, %v423
      %v429 = vcombine.low %v400, %v408
      %v430 = vcombine.low %v416, %v424
      %v432 = vunpack.c.l.s4 1966171168
      %v433 = vunpack.c.0.s8 %v432
      %v434 = vlaneseq
      %v435 = vshrl.u32 %v434, 7
      %v436 = vsub.s32 %v433, %v435
      %v437 = vrot.slane %v429, %v436
      %v439 = vunpack.c.l.s4 1966171168
      %v440 = vunpack.c.0.s8 %v439
      %v441 = vlaneseq
      %v442 = vshrl.u32 %v441, 7
      %v443 = vsub.s32 %v440, %v442
      %v444 = vrot.slane %v430, %v443
      %v445 = vcombine.low %v437, %v444
      %v447 = vunpack.c.l.s4 1966171168
      %v448 = vunpack.c.0.s8 %v447
      %v449 = vlaneseq
      %v450 = vshrl.u32 %v449, 7
      %v451 = vsub.s32 %v448, %v450
      %v452 = vrot.slane %v445, %v451
      %v454 = vlaneseq
      %vm455 = vcmp.ge.s32.totalorder %v454, 0
      %vm456 = vcmp.lt.s32.totalorder %v454, 512
      %vm457 = vmand %vm455, %vm456
      %458 = vst.msk [vmem:[%s170] sm:$0xf] %vm457, %v452
      %s459 = smul.u32 4, %s14
      %p460 = scmp.lt.s32.totalorder %s459, 7
      %s461 = scalar_select %p460, %s459, 7
      %s462 = scalar_lea.vmem %s3, %s461
      // Predicated region
      $region33: #{_dist_reward_jit.1} parent=31 // pred_check
        %p463 = pneg %p100
      $region34: #{_dist_reward_jit.1} parent=31 // pred_check_branch
        %465 = sbr.rel (%p463) target = $region36
      $region35: #{_dist_reward_jit.1} parent=31 // pred_region
        %s466 = smul.u32 4, %s14
      $region36: #{_dist_reward_jit.1} parent=31 // pred_fallthru
        _
    $region32: #{_dist_reward_jit.1} parent=5 // pred_fallthru
      _
    %p467 = scmp.le.s32.totalorder 2, %s9
    // Predicated region
    $region37: #{_dist_reward_jit.1} parent=5 // pred_check
      %p468 = pneg %p467
    $region38: #{_dist_reward_jit.1} parent=5 // pred_check_branch
      %470 = sbr.rel (%p468) target = $region40
    $region39: #{_dist_reward_jit.1} parent=5 // pred_region
      %s471 = ssub.s32 %s9, 2
      // Predicated region
      $region41: #{_dist_reward_jit.1} parent=39 // pred_check
        %p472 = pneg %p106
      $region42: #{_dist_reward_jit.1} parent=39 // pred_check_branch
        %474 = sbr.rel (%p472) target = $region44
      $region43: #{_dist_reward_jit.1} parent=39 // pred_region
        %s475 = smul.u32 4, %s15
        %p476 = scmp.lt.s32.totalorder %s475, 7
        %s477 = scalar_select %p476, %s475, 7
        %s478 = scalar_lea.vmem %s3, %s477
      $region44: #{_dist_reward_jit.1} parent=39 // pred_fallthru
        _
    $region40: #{_dist_reward_jit.1} parent=5 // pred_fallthru
      _
  $region6: #{_dist_reward_jit.1} parent=0 // loop_footer
    %s13 = sadd.s32 1, %s9
  $region7: #{_dist_reward_jit.1} parent=0 // loop_footer_branch
    %8 = sbr.rel target = $region3
  $region8: #{_dist_reward_jit.1} parent=0 // loop_exit
    _

</llo_original>
